<compile_context>
chip_gen: v7x
topology: tpu7x:2x2x1
jax: 0.10.0
libtpu: 0.0.40
codegen_flags: <defaults>
</compile_context>

<pallas_src>
import jax
import jax.numpy as jnp
from jax.experimental import pallas as pl
from jax.experimental.pallas import tpu as pltpu

LANES = 128
_FUSED_MAX_N = 2048          # bf16 N^2 adjacency <= 8 MiB -> keep resident

_CompilerParams = getattr(pltpu, "CompilerParams", None) or getattr(
    pltpu, "TPUCompilerParams")


def _round_up(x, m):
    return (x + m - 1) // m * m


# ---------------------------------------------------------------------------
# Normalized adjacency (dense), matching PyG gcn_norm semantics.
# ---------------------------------------------------------------------------
def build_normalized_adjacency(edge_index, edge_weight, num_nodes):
    """Dense A_hat = D^-1/2 (A + I) D^-1/2.

    Matches PyG's add_remaining_self_loops: nodes that already have a
    self-loop keep its weight (no double counting); all other nodes get a
    self-loop of weight 1.
    """
    src, dst = edge_index[0], edge_index[1]
    ew = edge_weight.astype(jnp.float32)
    is_loop = src == dst

    loop_w = jnp.ones((num_nodes,), jnp.float32)
    loop_w = loop_w.at[jnp.where(is_loop, src, num_nodes)].set(
        jnp.where(is_loop, ew, 1.0), mode="drop")
    ew = jnp.where(is_loop, 0.0, ew)       # existing loops replaced above

    nodes = jnp.arange(num_nodes, dtype=src.dtype)
    all_src = jnp.concatenate([src, nodes])
    all_dst = jnp.concatenate([dst, nodes])
    all_w = jnp.concatenate([ew, loop_w])

    deg = jnp.zeros((num_nodes,), jnp.float32).at[all_dst].add(all_w)
    d_inv_sqrt = jnp.where(deg > 0, jax.lax.rsqrt(deg), 0.0)
    norm = d_inv_sqrt[all_src] * all_w * d_inv_sqrt[all_dst]
    # Message passing: out[i] = sum_{e: dst_e == i} norm_e * x[src_e]
    adj = jnp.zeros((num_nodes, num_nodes), jnp.float32)
    adj = adj.at[all_dst, all_src].add(norm)
    return adj


# ---------------------------------------------------------------------------
# Fused kernel (small-N regime): adjacency resident in VMEM, read once,
# reused by all three layers.
# ---------------------------------------------------------------------------
def _gcn_fused_kernel(adj_ref, x_ref, w1_ref, b1_ref, w2_ref, b2_ref,
                      w3_ref, b3_ref, wl_ref, bl_ref, out_ref):
    adj = adj_ref[...]                      # bf16, read once, reused 3x

    # Layer 1: aggregate first (input_dim < hidden_dim1).
    agg = jnp.dot(adj, x_ref[...], preferred_element_type=jnp.float32)
    h = jnp.dot(agg, w1_ref[...], preferred_element_type=jnp.float32)
    h = jnp.maximum(h + b1_ref[...], 0.0)

    # Layer 2: project first (hidden_dim1 -> hidden_dim2 shrinks).
    p = jnp.dot(h, w2_ref[...], preferred_element_type=jnp.float32)
    h = jnp.dot(adj, p.astype(adj.dtype), preferred_element_type=jnp.float32)
    h = jnp.maximum(h + b2_ref[...], 0.0)

    # Layer 3: project first.
    p = jnp.dot(h, w3_ref[...], preferred_element_type=jnp.float32)
    h = jnp.dot(adj, p.astype(adj.dtype), preferred_element_type=jnp.float32)
    h = jnp.maximum(h + b3_ref[...], 0.0)

    # Head: Linear(hidden3, 1) as a VPU reduction + sigmoid, lane-dense store.
    y = jnp.sum(h * wl_ref[...], axis=-1, keepdims=True) + bl_ref[...]
    y = jax.nn.sigmoid(y)
    out_ref[...] = jnp.broadcast_to(y, out_ref.shape).astype(out_ref.dtype)


def _fused_call(adj, x, w1, b1, w2, b2, w3, b3, wl_row, bl):
    n_p = adj.shape[0]
    operands = (adj, x, w1, b1, w2, b2, w3, b3, wl_row, bl)

    def full_spec(arr):
        return pl.BlockSpec(arr.shape, lambda: (0, 0))

    d_in, h1 = w1.shape
    h2, h3 = w2.shape[1], w3.shape[1]
    flops = 2 * n_p * n_p * (d_in + h2 + h3) + 2 * n_p * (
        d_in * h1 + h1 * h2 + h2 * h3 + h3)
    bytes_accessed = int(sum(int(a.size) * a.dtype.itemsize for a in operands)
                         + n_p * LANES * 4)
    vmem_bytes = int(2 * adj.size * adj.dtype.itemsize + (16 << 20))
    vmem_bytes = min(max(vmem_bytes, 24 << 20), 60 << 20)

    return pl.pallas_call(
        _gcn_fused_kernel,
        out_shape=jax.ShapeDtypeStruct((n_p, LANES), jnp.float32),
        grid=(),
        in_specs=[full_spec(a) for a in operands],
        out_specs=pl.BlockSpec((n_p, LANES), lambda: (0, 0)),
        compiler_params=_CompilerParams(vmem_limit_bytes=vmem_bytes),
        cost_estimate=pl.CostEstimate(flops=int(flops), transcendentals=n_p,
                                      bytes_accessed=bytes_accessed),
    )(*operands)


# ---------------------------------------------------------------------------
# Tiled per-layer kernel (large-N regime):
#   grid = (row_tiles, k_tiles)  ->  ("parallel", "arbitrary")
#   acc[i] = sum_k adj[i, k] @ p[k]   (bf16 x bf16, f32 accumulate)
#   out[i] = epilogue(acc[i], *params)   on the last k step
# ---------------------------------------------------------------------------
def _make_layer_kernel(epilogue, n_params):
    def kernel(adj_ref, p_ref, *rest):
        param_refs = rest[:n_params]
        out_ref = rest[n_params]
        acc_ref = rest[n_params + 1]
        k = pl.program_id(1)

        @pl.when(k == 0)
        def _():
            acc_ref[...] = jnp.zeros_like(acc_ref)

        acc_ref[...] += jnp.dot(adj_ref[...], p_ref[...],
                                preferred_element_type=jnp.float32)

        @pl.when(k == pl.num_programs(1) - 1)
        def _():
            out_ref[...] = epilogue(acc_ref[...],
                                    *[r[...] for r in param_refs])

    return kernel


def _epilogue_layer1(acc, w1, b1, w2):
    # relu((A_hat @ X) @ W1 + b1), then pre-project with W2 for layer 2.
    h = jnp.maximum(
        jnp.dot(acc, w1, preferred_element_type=jnp.float32) + b1, 0.0)
    return jnp.dot(h, w2,
                   preferred_element_type=jnp.float32).astype(jnp.bfloat16)


def _epilogue_layer2(acc, b2, w3):
    # relu(A_hat @ (H1 @ W2) + b2), then pre-project with W3 for layer 3.
    h = jnp.maximum(acc + b2, 0.0)
    return jnp.dot(h, w3,
                   preferred_element_type=jnp.float32).astype(jnp.bfloat16)


def _epilogue_layer3(acc, b3, wl_row, bl):
    # relu(A_hat @ (H2 @ W3) + b3), then Linear(hidden3, 1) as VPU reduction
    # + sigmoid, broadcast lane-dense to width 128.
    h = jnp.maximum(acc + b3, 0.0)
    y = jnp.sum(h * wl_row, axis=-1, keepdims=True) + bl
    y = jax.nn.sigmoid(y)
    return jnp.broadcast_to(y, (y.shape[0], LANES)).astype(jnp.float32)


def _layer_call(adj, p, params, epilogue, out_dim, out_dtype, tm, tk,
                transcendentals=0):
    n_p = adj.shape[0]
    f = p.shape[1]
    grid = (n_p // tm, n_p // tk)

    in_specs = [
        pl.BlockSpec((tm, tk), lambda i, k: (i, k)),   # adjacency strip
        pl.BlockSpec((tk, f), lambda i, k: (k, 0)),    # feature K-tile
    ] + [pl.BlockSpec(a.shape, lambda i, k: (0, 0)) for a in params]

    vmem_bytes = int(
        2 * tm * tk * adj.dtype.itemsize            # double-buffered adj strip
        + 2 * tk * f * p.dtype.itemsize             # double-buffered features
        + 2 * tm * out_dim * jnp.dtype(out_dtype).itemsize
        + tm * f * 4                                # f32 accumulator
        + sum(int(a.size) * 4 for a in params)
        + (8 << 20))                                # headroom
    vmem_bytes = min(max(vmem_bytes, 16 << 20), 60 << 20)

    cost = pl.CostEstimate(
        flops=int(2 * n_p * n_p * f),
        transcendentals=int(transcendentals),
        bytes_accessed=int(adj.size * adj.dtype.itemsize
                           + grid[0] * p.size * p.dtype.itemsize
                           + n_p * out_dim * jnp.dtype(out_dtype).itemsize))

    return pl.pallas_call(
        _make_layer_kernel(epilogue, len(params)),
        out_shape=jax.ShapeDtypeStruct((n_p, out_dim), out_dtype),
        grid=grid,
        in_specs=in_specs,
        out_specs=pl.BlockSpec((tm, out_dim), lambda i, k: (i, 0)),
        scratch_shapes=[pltpu.VMEM((tm, f), jnp.float32)],
        compiler_params=_CompilerParams(
            dimension_semantics=("parallel", "arbitrary"),
            vmem_limit_bytes=vmem_bytes),
        cost_estimate=cost,
    )(adj, p, *params)


# ---------------------------------------------------------------------------
# Public forward pass.
# ---------------------------------------------------------------------------
def gcn_conv_forward(X, edge_index, edge_weight, params, *, force_tiled=False):
    """Forward pass of GCN_Conv (eval mode; dropout = identity)."""
    n = X.shape[0]
    (w1, b1), (w2, b2), (w3, b3), (wl, bl) = params
    wl_row = wl.reshape(1, -1).astype(jnp.float32)
    bl2 = jnp.asarray(bl, jnp.float32).reshape(1, 1)

    # TODO(synk): for genuinely large sparse graphs, replace the dense O(N^2)
    # adjacency build + dense aggregation with a CSR + scalar-prefetch kernel.
    adj = build_normalized_adjacency(edge_index, edge_weight, n)

    if (not force_tiled) and n <= _FUSED_MAX_N:
        fused = True
        n_pad = _round_up(n, 16)
        tm = tk = n_pad
    else:
        fused = False
        if n >= 512:
            tm, tk = 256, 512
        else:
            tm = tk = _round_up(n, 16)
        n_pad = _round_up(n, max(tm, tk))

    adj_p = jnp.pad(adj, ((0, n_pad - n), (0, n_pad - n))).astype(jnp.bfloat16)
    x_p = jnp.pad(X.astype(jnp.float32),
                  ((0, n_pad - n), (0, 0))).astype(jnp.bfloat16)

    if fused:
        y = _fused_call(adj_p, x_p, w1, b1, w2, b2, w3, b3, wl_row, bl2)
    else:
        # One tiled pass per layer; each epilogue pre-applies the next layer's
        # projection so every N^2 aggregation runs at min(F_in, F_out) width.
        p2 = _layer_call(adj_p, x_p, (w1, b1, w2), _epilogue_layer1,
                         out_dim=w2.shape[1], out_dtype=jnp.bfloat16,
                         tm=tm, tk=tk)
        p3 = _layer_call(adj_p, p2, (b2, w3), _epilogue_layer2,
                         out_dim=w3.shape[1], out_dtype=jnp.bfloat16,
                         tm=tm, tk=tk)
        y = _layer_call(adj_p, p3, (b3, wl_row, bl2), _epilogue_layer3,
                        out_dim=LANES, out_dtype=jnp.float32,
                        tm=tm, tk=tk, transcendentals=n_pad)
    return y[:n, 0]            # lane-dense (rows, 128) -> column 0, squeeze(1)


# ---------------------------------------------------------------------------
# Reference (pure JAX, f32) + parameter init + demo.
# ---------------------------------------------------------------------------
def gcn_reference(X, edge_index, edge_weight, params):
    adj = build_normalized_adjacency(edge_index, edge_weight, X.shape[0])
    (w1, b1), (w2, b2), (w3, b3), (wl, bl) = params
    h = jnp.maximum(adj @ (X @ w1) + b1, 0.0)
    h = jnp.maximum(adj @ (h @ w2) + b2, 0.0)
    h = jnp.maximum(adj @ (h @ w3) + b3, 0.0)
    return jax.nn.sigmoid(h @ wl + bl.reshape(1, 1))[:, 0]


def init_params(key, input_dim, hidden_dim1, hidden_dim2, hidden_dim3):
    """Deterministic init (glorot-ish weights, zero biases)."""
    ks = jax.random.split(key, 4)

    def glorot(k, fan_in, fan_out):
        limit = jnp.sqrt(6.0 / (fan_in + fan_out))
        return jax.random.uniform(k, (fan_in, fan_out), jnp.float32,
                                  -limit, limit)

    w1 = glorot(ks[0], input_dim, hidden_dim1)
    w2 = glorot(ks[1], hidden_dim1, hidden_dim2)
    w3 = glorot(ks[2], hidden_dim2, hidden_dim3)
    wl = glorot(ks[3], hidden_dim3, 1)
    b1 = jnp.zeros((1, hidden_dim1), jnp.float32)
    b2 = jnp.zeros((1, hidden_dim2), jnp.float32)
    b3 = jnp.zeros((1, hidden_dim3), jnp.float32)
    bl = jnp.zeros((1, 1), jnp.float32)
    return ((w1, b1), (w2, b2), (w3, b3), (wl, bl))


if __name__ == "__main__":
    key = jax.random.PRNGKey(0)
    k_x, k_ei, k_ew, k_p, k_x2, k_ei2, k_ew2 = jax.random.split(key, 7)

    input_dim, hidden_dim1, hidden_dim2, hidden_dim3 = 16, 32, 16, 8
    params = init_params(k_p, input_dim, hidden_dim1, hidden_dim2, hidden_dim3)

    # Small graph -> fused single-kernel path (adjacency resident in VMEM).
    n_small, e_small = 8, 16
    X = jax.random.normal(k_x, (n_small, input_dim), dtype=jnp.float32)
    ei = jax.random.randint(k_ei, (2, e_small), 0, n_small, dtype=jnp.int32)
    ew = jax.random.uniform(k_ew, (e_small,), dtype=jnp.float32)

    out = gcn_conv_forward(X, ei, ew, params)
    jax.block_until_ready(out)
    assert out.shape == (n_small,)
    ref = gcn_reference(X, ei, ew, params)
    assert jnp.allclose(out, ref, atol=7.5e-2), float(
        jnp.max(jnp.abs(out - ref)))

    # Larger graph -> tiled per-layer path (256x512 bf16 adjacency strips,
    # "parallel" row axis, "arbitrary" K reduction axis).
    n_big, e_big = 1024, 4096
    Xb = jax.random.normal(k_x2, (n_big, input_dim), dtype=jnp.float32)
    eib = jax.random.randint(k_ei2, (2, e_big), 0, n_big, dtype=jnp.int32)
    ewb = jax.random.uniform(k_ew2, (e_big,), dtype=jnp.float32)

    out_b = gcn_conv_forward(Xb, eib, ewb, params, force_tiled=True)
    jax.block_until_ready(out_b)
    assert out_b.shape == (n_big,)
    ref_b = gcn_reference(Xb, eib, ewb, params)
    assert jnp.allclose(out_b, ref_b, atol=7.5e-2), float(
        jnp.max(jnp.abs(out_b - ref_b)))

    print("KERNEL_OK")
</pallas_src>

<mosaic_0001>
module attributes {stable_mosaic.version = 11 : i64} {
  func.func @_gcn_fused_kernel(%arg0: memref<16x16xbf16, #tpu.memory_space<vmem>>, %arg1: memref<16x16xbf16, #tpu.memory_space<vmem>>, %arg2: memref<16x32xf32, #tpu.memory_space<vmem>>, %arg3: memref<1x32xf32, #tpu.memory_space<vmem>>, %arg4: memref<32x16xf32, #tpu.memory_space<vmem>>, %arg5: memref<1x16xf32, #tpu.memory_space<vmem>>, %arg6: memref<16x8xf32, #tpu.memory_space<vmem>>, %arg7: memref<1x8xf32, #tpu.memory_space<vmem>>, %arg8: memref<1x8xf32, #tpu.memory_space<vmem>>, %arg9: memref<1x1xf32, #tpu.memory_space<vmem>>, %arg10: memref<16x128xf32, #tpu.memory_space<vmem>>) attributes {dimension_semantics = [], scalar_prefetch = 0 : i64, scratch_operands = 0 : i64, tpu.core_type = #tpu.core_type<tc>} {
    %c0 = arith.constant 0 : index
    %c0_0 = arith.constant 0 : index
    %0 = vector.load %arg0[%c0, %c0_0] : memref<16x16xbf16, #tpu.memory_space<vmem>>, vector<16x16xbf16>
    %c0_1 = arith.constant 0 : index
    %c0_2 = arith.constant 0 : index
    %1 = vector.load %arg1[%c0_1, %c0_2] : memref<16x16xbf16, #tpu.memory_space<vmem>>, vector<16x16xbf16>
    %cst = arith.constant dense<0.000000e+00> : vector<16x16xf32>
    %2 = tpu.matmul %0, %1, %cst {dimension_numbers = #tpu.dot_dimension_numbers<[1], [0], [0], [1], [0, 0, 1, 1], [], []>} : vector<16x16xbf16>, vector<16x16xbf16>, vector<16x16xf32> -> vector<16x16xf32>
    %c0_3 = arith.constant 0 : index
    %c0_4 = arith.constant 0 : index
    %3 = vector.load %arg2[%c0_3, %c0_4] : memref<16x32xf32, #tpu.memory_space<vmem>>, vector<16x32xf32>
    %cst_5 = arith.constant dense<0.000000e+00> : vector<16x32xf32>
    %4 = tpu.matmul %2, %3, %cst_5 {dimension_numbers = #tpu.dot_dimension_numbers<[1], [0], [0], [1], [0, 0, 1, 1], [], []>} : vector<16x16xf32>, vector<16x32xf32>, vector<16x32xf32> -> vector<16x32xf32>
    %c0_6 = arith.constant 0 : index
    %c0_7 = arith.constant 0 : index
    %5 = vector.load %arg3[%c0_6, %c0_7] : memref<1x32xf32, #tpu.memory_space<vmem>>, vector<1x32xf32>
    %6 = vector.broadcast %5 : vector<1x32xf32> to vector<16x32xf32>
    %7 = arith.addf %4, %6 : vector<16x32xf32>
    %cst_8 = arith.constant 0.000000e+00 : f32
    %8 = vector.broadcast %cst_8 : f32 to vector<16x32xf32>
    %9 = arith.maximumf %7, %8 : vector<16x32xf32>
    %c0_9 = arith.constant 0 : index
    %c0_10 = arith.constant 0 : index
    %10 = vector.load %arg4[%c0_9, %c0_10] : memref<32x16xf32, #tpu.memory_space<vmem>>, vector<32x16xf32>
    %cst_11 = arith.constant dense<0.000000e+00> : vector<16x16xf32>
    %11 = tpu.matmul %9, %10, %cst_11 {dimension_numbers = #tpu.dot_dimension_numbers<[1], [0], [0], [1], [0, 0, 1, 1], [], []>} : vector<16x32xf32>, vector<32x16xf32>, vector<16x16xf32> -> vector<16x16xf32>
    %12 = arith.truncf %11 : vector<16x16xf32> to vector<16x16xbf16>
    %cst_12 = arith.constant dense<0.000000e+00> : vector<16x16xf32>
    %13 = tpu.matmul %0, %12, %cst_12 {dimension_numbers = #tpu.dot_dimension_numbers<[1], [0], [0], [1], [0, 0, 1, 1], [], []>} : vector<16x16xbf16>, vector<16x16xbf16>, vector<16x16xf32> -> vector<16x16xf32>
    %c0_13 = arith.constant 0 : index
    %c0_14 = arith.constant 0 : index
    %14 = vector.load %arg5[%c0_13, %c0_14] : memref<1x16xf32, #tpu.memory_space<vmem>>, vector<1x16xf32>
    %15 = vector.broadcast %14 : vector<1x16xf32> to vector<16x16xf32>
    %16 = arith.addf %13, %15 : vector<16x16xf32>
    %cst_15 = arith.constant 0.000000e+00 : f32
    %17 = vector.broadcast %cst_15 : f32 to vector<16x16xf32>
    %18 = arith.maximumf %16, %17 : vector<16x16xf32>
    %c0_16 = arith.constant 0 : index
    %c0_17 = arith.constant 0 : index
    %19 = vector.load %arg6[%c0_16, %c0_17] : memref<16x8xf32, #tpu.memory_space<vmem>>, vector<16x8xf32>
    %cst_18 = arith.constant dense<0.000000e+00> : vector<16x8xf32>
    %20 = tpu.matmul %18, %19, %cst_18 {dimension_numbers = #tpu.dot_dimension_numbers<[1], [0], [0], [1], [0, 0, 1, 1], [], []>} : vector<16x16xf32>, vector<16x8xf32>, vector<16x8xf32> -> vector<16x8xf32>
    %21 = arith.truncf %20 : vector<16x8xf32> to vector<16x8xbf16>
    %cst_19 = arith.constant dense<0.000000e+00> : vector<16x8xf32>
    %22 = tpu.matmul %0, %21, %cst_19 {dimension_numbers = #tpu.dot_dimension_numbers<[1], [0], [0], [1], [0, 0, 1, 1], [], []>} : vector<16x16xbf16>, vector<16x8xbf16>, vector<16x8xf32> -> vector<16x8xf32>
    %c0_20 = arith.constant 0 : index
    %c0_21 = arith.constant 0 : index
    %23 = vector.load %arg7[%c0_20, %c0_21] : memref<1x8xf32, #tpu.memory_space<vmem>>, vector<1x8xf32>
    %24 = vector.broadcast %23 : vector<1x8xf32> to vector<16x8xf32>
    %25 = arith.addf %22, %24 : vector<16x8xf32>
    %cst_22 = arith.constant 0.000000e+00 : f32
    %26 = vector.broadcast %cst_22 : f32 to vector<16x8xf32>
    %27 = arith.maximumf %25, %26 : vector<16x8xf32>
    %c0_23 = arith.constant 0 : index
    %c0_24 = arith.constant 0 : index
    %28 = vector.load %arg8[%c0_23, %c0_24] : memref<1x8xf32, #tpu.memory_space<vmem>>, vector<1x8xf32>
    %29 = vector.broadcast %28 : vector<1x8xf32> to vector<16x8xf32>
    %30 = arith.mulf %27, %29 : vector<16x8xf32>
    %cst_25 = arith.constant dense<0.000000e+00> : vector<16xf32>
    %31 = vector.multi_reduction <add>, %30, %cst_25 [1] : vector<16x8xf32> to vector<16xf32>
    %32 = vector.shape_cast %31 : vector<16xf32> to vector<16x1xf32>
    %c0_26 = arith.constant 0 : index
    %c0_27 = arith.constant 0 : index
    %33 = vector.load %arg9[%c0_26, %c0_27] : memref<1x1xf32, #tpu.memory_space<vmem>>, vector<1x1xf32>
    %34 = vector.broadcast %33 : vector<1x1xf32> to vector<16x1xf32>
    %35 = arith.addf %32, %34 : vector<16x1xf32>
    %36 = arith.negf %35 : vector<16x1xf32>
    %37 = math.exp %36 : vector<16x1xf32>
    %cst_28 = arith.constant 1.000000e+00 : f32
    %38 = vector.broadcast %cst_28 : f32 to vector<16x1xf32>
    %39 = arith.addf %38, %37 : vector<16x1xf32>
    %40 = arith.divf %38, %39 : vector<16x1xf32>
    %41 = vector.shape_cast %40 : vector<16x1xf32> to vector<16x1xf32>
    %42 = vector.broadcast %41 : vector<16x1xf32> to vector<16x128xf32>
    %c0_29 = arith.constant 0 : index
    %c0_30 = arith.constant 0 : index
    %43 = vector.load %arg10[%c0_29, %c0_30] : memref<16x128xf32, #tpu.memory_space<vmem>>, vector<16x128xf32>
    tpu.vector_store %arg10[%c0_29, %c0_30], %42 {strides = array<i32>} : memref<16x128xf32, #tpu.memory_space<vmem>>, vector<16x128xf32>,
    return
  }
}

</mosaic_0001>

<llo_original>
// kernel: tpu_custom_call.1
$region0: #{tpu_custom_call.1}
  #allocation0 [shape = 'u32[]', space=smem, size = 0x4, offset = 0x4, fixed_abs, tag = 'smem constant byte address 0x4 - core index']
  #allocation1 [shape = 'u32[144,128]{1,0:T(1,128)}', space=vmem, size = 0x12000, scoped, tag = 'internal scratch']
  #allocation2 [shape = 'f32[1,1]{1,0:T(1,128)S(1)}', space=vmem, size = 0x200, scoped, tag = 'scoped memory for tpu_custom_call.1']
  %s0 = inlined_call_operand.vmem [shape: bf16[16,16], index: 0, kind: input, shape index: {}]
  %s1 = inlined_call_operand.vmem [shape: bf16[16,16], index: 1, kind: input, shape index: {}]
  %s2 = inlined_call_operand.vmem [shape: f32[16,32], index: 2, kind: input, shape index: {}]
  %s3 = inlined_call_operand.vmem [shape: f32[1,32], index: 3, kind: input, shape index: {}]
  %s4 = inlined_call_operand.vmem [shape: f32[32,16], index: 4, kind: input, shape index: {}]
  %s5 = inlined_call_operand.vmem [shape: f32[1,16], index: 5, kind: input, shape index: {}]
  %s6 = inlined_call_operand.vmem [shape: f32[16,8], index: 6, kind: input, shape index: {}]
  %s7 = inlined_call_operand.vmem [shape: f32[1,8], index: 7, kind: input, shape index: {}]
  %s8 = inlined_call_operand.vmem [shape: f32[1,8], index: 8, kind: input, shape index: {}]
  %s9 = inlined_call_operand.<no memory space> [shape: f32[1,1], index: 9, kind: input, shape index: {}]
  %s10 = inlined_call_operand.hbm [shape: f32[16,128], index: 10, kind: output, shape index: {}]
  %s11 = sld [smem:[#allocation0]]
  $region50: #{tpu_custom_call.1} parent=0
    _
  %s13 = ssub.s32 1, %s11
  %s14 = scalar_select 0, %s13, %s11
  %v15 = vstv %s9
  %16 = vst [vmem:[#allocation2] sm:$0x1] %v15
  $region1: #{tpu_custom_call.1} parent=0
    #allocation3 [shape = 'u8[8192]{0}', space=vmem, size = 0x2000, scoped, tag = 'output window, operand 0, single buffered']
    #allocation4 [shape = 's32[1]{0}', space=sflag, size = 0x4, scoped, tag = 'scoped memory for tpu_custom_call.1']
    %17 = vsyncpa [#allocation4], 0
    // Predicated region
    $region2: #{tpu_custom_call.1} parent=1 // pred_check
      _
    $region3: #{tpu_custom_call.1} parent=1 // pred_check_branch
      %19 = sbr.rel (0) target = $region5
    $region4: #{tpu_custom_call.1} parent=1 // pred_region
      _
    $region5: #{tpu_custom_call.1} parent=1 // pred_fallthru
      _
    // Predicated region
    $region6: #{tpu_custom_call.1} parent=1 // pred_check
      _
    $region7: #{tpu_custom_call.1} parent=1 // pred_check_branch
      %21 = sbr.rel (0) target = $region9
    $region8: #{tpu_custom_call.1} parent=1 // pred_region
      _
    $region9: #{tpu_custom_call.1} parent=1 // pred_fallthru
      _
    // Predicated region
    $region10: #{tpu_custom_call.1} parent=1 // pred_check
      _
    $region11: #{tpu_custom_call.1} parent=1 // pred_check_branch
      %23 = sbr.rel (0) target = $region13
    $region12: #{tpu_custom_call.1} parent=1 // pred_region
      _
    $region13: #{tpu_custom_call.1} parent=1 // pred_fallthru
      _
    // Predicated region
    $region14: #{tpu_custom_call.1} parent=1 // pred_check
      _
    $region15: #{tpu_custom_call.1} parent=1 // pred_check_branch
      %25 = sbr.rel (0) target = $region17
    $region16: #{tpu_custom_call.1} parent=1 // pred_region
      _
    $region17: #{tpu_custom_call.1} parent=1 // pred_fallthru
      _
    // Predicated region
    $region18: #{tpu_custom_call.1} parent=1 // pred_check
      _
    $region19: #{tpu_custom_call.1} parent=1 // pred_check_branch
      %27 = sbr.rel (0) target = $region21
    $region20: #{tpu_custom_call.1} parent=1 // pred_region
      _
    $region21: #{tpu_custom_call.1} parent=1 // pred_fallthru
      _
    // Predicated region
    $region22: #{tpu_custom_call.1} parent=1 // pred_check
      _
    $region23: #{tpu_custom_call.1} parent=1 // pred_check_branch
      %29 = sbr.rel (0) target = $region25
    $region24: #{tpu_custom_call.1} parent=1 // pred_region
      _
    $region25: #{tpu_custom_call.1} parent=1 // pred_fallthru
      _
    // Predicated region
    $region26: #{tpu_custom_call.1} parent=1 // pred_check
      _
    $region27: #{tpu_custom_call.1} parent=1 // pred_check_branch
      %31 = sbr.rel (0) target = $region29
    $region28: #{tpu_custom_call.1} parent=1 // pred_region
      _
    $region29: #{tpu_custom_call.1} parent=1 // pred_fallthru
      _
    // Predicated region
    $region30: #{tpu_custom_call.1} parent=1 // pred_check
      _
    $region31: #{tpu_custom_call.1} parent=1 // pred_check_branch
      %33 = sbr.rel (0) target = $region33
    $region32: #{tpu_custom_call.1} parent=1 // pred_region
      _
    $region33: #{tpu_custom_call.1} parent=1 // pred_fallthru
      _
    // Predicated region
    $region34: #{tpu_custom_call.1} parent=1 // pred_check
      _
    $region35: #{tpu_custom_call.1} parent=1 // pred_check_branch
      %35 = sbr.rel (0) target = $region37
    $region36: #{tpu_custom_call.1} parent=1 // pred_region
      _
    $region37: #{tpu_custom_call.1} parent=1 // pred_fallthru
      _
    // Predicated region
    $region38: #{tpu_custom_call.1} parent=1 // pred_check
      _
    $region39: #{tpu_custom_call.1} parent=1 // pred_check_branch
      %37 = sbr.rel (0) target = $region41
    $region40: #{tpu_custom_call.1} parent=1 // pred_region
      _
    $region41: #{tpu_custom_call.1} parent=1 // pred_fallthru
      _
    %v39 = vld [vmem:[%s0] sm:$0xf]
    %v40 = vld [vmem:[%s0 + $0x4] sm:$0xf]
    %v41 = vld [vmem:[%s1] sm:$0xf]
    %v42 = vld [vmem:[%s1 + $0x4] sm:$0xf]
    %v45 = vunpack.c.l.b16 %v39
    %v46 = vunpack.c.l.b16 %v40
    %v47 = vpack.c.b16 %v46, %v45
    %v50 = vunpack.c.l.b16 %v41
    %v51 = vunpack.c.l.b16 %v42
    %v52 = vpack.c.b16 %v51, %v50
    %vm54 = vcmask 130048
    %v56 = vsel %vm54, %v47, 0
    %58 = vmatprep.subr.bf16.mxu0 0
    %59 = vmatpush1.bf16.msra.mxu0 %v52
    %60 = vmatprep.subr.bf16.mxu0 0
    %61 = vmatpush1.bf16.msra.mxu0 0
    %62 = vmatprep.subr.bf16.mxu0 0
    %63 = vmatpush1.bf16.msra.mxu0 0
    %64 = vmatprep.subr.bf16.mxu0 0
    %65 = vmatpush1.bf16.msra.mxu0 0
    %66 = vmatprep.subr.bf16.mxu0 0
    %67 = vmatpush1.bf16.msra.mxu0 0
    %68 = vmatprep.subr.bf16.mxu0 0
    %69 = vmatpush1.bf16.msra.mxu0 0
    %70 = vmatprep.subr.bf16.mxu0 0
    %71 = vmatpush1.bf16.msra.mxu0 0
    %72 = vmatprep.subr.bf16.mxu0 0
    %73 = vmatpush1.bf16.msra.mxu0 0
    %74 = vmatprep.subr.bf16.mxu0 0
    %75 = vmatpush1.bf16.msra.mxu0 0
    %76 = vmatprep.subr.bf16.mxu0 0
    %77 = vmatpush1.bf16.msra.mxu0 0
    %78 = vmatprep.subr.bf16.mxu0 0
    %79 = vmatpush1.bf16.msra.mxu0 0
    %80 = vmatprep.subr.bf16.mxu0 0
    %81 = vmatpush1.bf16.msra.mxu0 0
    %82 = vmatprep.subr.bf16.mxu0 0
    %83 = vmatpush1.bf16.msra.mxu0 0
    %84 = vmatprep.subr.bf16.mxu0 0
    %85 = vmatpush1.bf16.msra.mxu0 0
    %86 = vmatprep.subr.bf16.mxu0 0
    %87 = vmatpush1.bf16.msra.mxu0 0
    %88 = vmatprep.subr.bf16.mxu0 0
    %89 = vmatpush1.bf16.msra.mxu0 0
    %90 = vmatprep.mubr.bf16.mxu0 0
    %91 = vmatmul.mubr.bf16.gmra.mrb[0].mxu0 %v56
    %v92 = vpop.f32.mrb[0].mxu0
    %v93 = vadd.f32 0.0, %v92
    %v94 = vpop.f32.mrb[0].mxu0
    %v95 = vpop.f32.mrb[0].mxu0
    %v96 = vadd.f32 0.0, %v95
    %v97 = vpop.f32.mrb[0].mxu0
    %98 = vdwg.mxu0
    %v99 = vld [vmem:[%s2] sm:$0xff]
    %v100 = vld [vmem:[%s2 + $0x8] sm:$0xff]
    %v101 = vld [vmem:[%s3] sm:$0x1]
    %v103 = vlaneseq
    %v104 = vshrl.u32 %v103, 7
    %v105 = vsub.s32 0, %v104
    %v106 = vrot.slane %v101, %v105
    %v109 = vsel %vm54, %v93, 0
    %v112 = vsel %vm54, %v96, 0
    %114 = vmatprep.subr.mxu0 0.0
    %115 = vmatpush1.msra.mxu0 %v99
    %116 = vmatprep.subr.mxu0 0.0
    %117 = vmatpush1.msra.mxu0 %v100
    %118 = vmatprep.subr.mxu0 0.0
    %119 = vmatpush1.msra.mxu0 0.0
    %120 = vmatprep.subr.mxu0 0.0
    %121 = vmatpush1.msra.mxu0 0.0
    %122 = vmatprep.subr.mxu0 0.0
    %123 = vmatpush1.msra.mxu0 0.0
    %124 = vmatprep.subr.mxu0 0.0
    %125 = vmatpush1.msra.mxu0 0.0
    %126 = vmatprep.subr.mxu0 0.0
    %127 = vmatpush1.msra.mxu0 0.0
    %128 = vmatprep.subr.mxu0 0.0
    %129 = vmatpush1.msra.mxu0 0.0
    %130 = vmatprep.subr.mxu0 0.0
    %131 = vmatpush1.msra.mxu0 0.0
    %132 = vmatprep.subr.mxu0 0.0
    %133 = vmatpush1.msra.mxu0 0.0
    %134 = vmatprep.subr.mxu0 0.0
    %135 = vmatpush1.msra.mxu0 0.0
    %136 = vmatprep.subr.mxu0 0.0
    %137 = vmatpush1.msra.mxu0 0.0
    %138 = vmatprep.subr.mxu0 0.0
    %139 = vmatpush1.msra.mxu0 0.0
    %140 = vmatprep.subr.mxu0 0.0
    %141 = vmatpush1.msra.mxu0 0.0
    %142 = vmatprep.subr.mxu0 0.0
    %143 = vmatpush1.msra.mxu0 0.0
    %144 = vmatprep.subr.mxu0 0.0
    %145 = vmatpush1.msra.mxu0 0.0
    %146 = vmatprep.subr.mxu0 0.0
    %147 = vmatpush1.msra.mxu0 0.0
    %148 = vmatprep.subr.mxu0 0.0
    %149 = vmatpush1.msra.mxu0 0.0
    %150 = vmatprep.subr.mxu0 0.0
    %151 = vmatpush1.msra.mxu0 0.0
    %152 = vmatprep.subr.mxu0 0.0
    %153 = vmatpush1.msra.mxu0 0.0
    %154 = vmatprep.subr.mxu0 0.0
    %155 = vmatpush1.msra.mxu0 0.0
    %156 = vmatprep.subr.mxu0 0.0
    %157 = vmatpush1.msra.mxu0 0.0
    %158 = vmatprep.subr.mxu0 0.0
    %159 = vmatpush1.msra.mxu0 0.0
    %160 = vmatprep.subr.mxu0 0.0
    %161 = vmatpush1.msra.mxu0 0.0
    %162 = vmatprep.subr.mxu0 0.0
    %163 = vmatpush1.msra.mxu0 0.0
    %164 = vmatprep.subr.mxu0 0.0
    %165 = vmatpush1.msra.mxu0 0.0
    %166 = vmatprep.subr.mxu0 0.0
    %167 = vmatpush1.msra.mxu0 0.0
    %168 = vmatprep.subr.mxu0 0.0
    %169 = vmatpush1.msra.mxu0 0.0
    %170 = vmatprep.subr.mxu0 0.0
    %171 = vmatpush1.msra.mxu0 0.0
    %172 = vmatprep.subr.mxu0 0.0
    %173 = vmatpush1.msra.mxu0 0.0
    %174 = vmatprep.subr.mxu0 0.0
    %175 = vmatpush1.msra.mxu0 0.0
    %176 = vmatprep.subr.mxu0 0.0
    %177 = vmatpush1.msra.mxu0 0.0
    %178 = vmatprep.mubr.f32.mxu0 0.0
    %179 = vmatmul.mubr.f32.gmra.mrb[0].mxu0 %v109
    %v180 = vpop.f32.mrb[0].mxu0
    %v181 = vadd.f32 %v106, %v180
    %v182 = vpop.f32.mrb[0].mxu0
    %183 = vmatprep.mubr.f32.mxu0 0.0
    %184 = vmatmul.mubr.f32.gmra.mrb[0].mxu0 %v112
    %v185 = vpop.f32.mrb[0].mxu0
    %v186 = vadd.f32 %v106, %v185
    %v187 = vpop.f32.mrb[0].mxu0
    %188 = vdwg.mxu0
    %v189 = vmax.f32 %v181, 0.0
    %v190 = vmax.f32 %v186, 0.0
    %v191 = vld [vmem:[%s4] sm:$0xff]
    %v192 = vld [vmem:[%s4 + $0x8] sm:$0xff]
    %v193 = vld [vmem:[%s4 + $0x10] sm:$0xff]
    %v194 = vld [vmem:[%s4 + $0x18] sm:$0xff]
    %vm195 = vcmask 261120
    %v197 = vsel %vm195, %v189, 0
    %v200 = vsel %vm195, %v190, 0
    %202 = vmatprep.subr.mxu0 0.0
    %203 = vmatpush1.msra.mxu0 %v191
    %204 = vmatprep.subr.mxu0 0.0
    %205 = vmatpush1.msra.mxu0 %v192
    %206 = vmatprep.subr.mxu0 0.0
    %207 = vmatpush1.msra.mxu0 %v193
    %208 = vmatprep.subr.mxu0 0.0
    %209 = vmatpush1.msra.mxu0 %v194
    %210 = vmatprep.subr.mxu0 0.0
    %211 = vmatpush1.msra.mxu0 0.0
    %212 = vmatprep.subr.mxu0 0.0
    %213 = vmatpush1.msra.mxu0 0.0
    %214 = vmatprep.subr.mxu0 0.0
    %215 = vmatpush1.msra.mxu0 0.0
    %216 = vmatprep.subr.mxu0 0.0
    %217 = vmatpush1.msra.mxu0 0.0
    %218 = vmatprep.subr.mxu0 0.0
    %219 = vmatpush1.msra.mxu0 0.0
    %220 = vmatprep.subr.mxu0 0.0
    %221 = vmatpush1.msra.mxu0 0.0
    %222 = vmatprep.subr.mxu0 0.0
    %223 = vmatpush1.msra.mxu0 0.0
    %224 = vmatprep.subr.mxu0 0.0
    %225 = vmatpush1.msra.mxu0 0.0
    %226 = vmatprep.subr.mxu0 0.0
    %227 = vmatpush1.msra.mxu0 0.0
    %228 = vmatprep.subr.mxu0 0.0
    %229 = vmatpush1.msra.mxu0 0.0
    %230 = vmatprep.subr.mxu0 0.0
    %231 = vmatpush1.msra.mxu0 0.0
    %232 = vmatprep.subr.mxu0 0.0
    %233 = vmatpush1.msra.mxu0 0.0
    %234 = vmatprep.subr.mxu0 0.0
    %235 = vmatpush1.msra.mxu0 0.0
    %236 = vmatprep.subr.mxu0 0.0
    %237 = vmatpush1.msra.mxu0 0.0
    %238 = vmatprep.subr.mxu0 0.0
    %239 = vmatpush1.msra.mxu0 0.0
    %240 = vmatprep.subr.mxu0 0.0
    %241 = vmatpush1.msra.mxu0 0.0
    %242 = vmatprep.subr.mxu0 0.0
    %243 = vmatpush1.msra.mxu0 0.0
    %244 = vmatprep.subr.mxu0 0.0
    %245 = vmatpush1.msra.mxu0 0.0
    %246 = vmatprep.subr.mxu0 0.0
    %247 = vmatpush1.msra.mxu0 0.0
    %248 = vmatprep.subr.mxu0 0.0
    %249 = vmatpush1.msra.mxu0 0.0
    %250 = vmatprep.subr.mxu0 0.0
    %251 = vmatpush1.msra.mxu0 0.0
    %252 = vmatprep.subr.mxu0 0.0
    %253 = vmatpush1.msra.mxu0 0.0
    %254 = vmatprep.subr.mxu0 0.0
    %255 = vmatpush1.msra.mxu0 0.0
    %256 = vmatprep.subr.mxu0 0.0
    %257 = vmatpush1.msra.mxu0 0.0
    %258 = vmatprep.subr.mxu0 0.0
    %259 = vmatpush1.msra.mxu0 0.0
    %260 = vmatprep.subr.mxu0 0.0
    %261 = vmatpush1.msra.mxu0 0.0
    %262 = vmatprep.subr.mxu0 0.0
    %263 = vmatpush1.msra.mxu0 0.0
    %264 = vmatprep.subr.mxu0 0.0
    %265 = vmatpush1.msra.mxu0 0.0
    %266 = vmatprep.mubr.f32.mxu0 0.0
    %267 = vmatmul.mubr.f32.gmra.mrb[0].mxu0 %v197
    %v268 = vpop.f32.mrb[0].mxu0
    %v269 = vadd.f32 0.0, %v268
    %v270 = vpop.f32.mrb[0].mxu0
    %271 = vmatprep.mubr.f32.mxu0 0.0
    %272 = vmatmul.mubr.f32.gmra.mrb[0].mxu0 %v200
    %v273 = vpop.f32.mrb[0].mxu0
    %v274 = vadd.f32 0.0, %v273
    %v275 = vpop.f32.mrb[0].mxu0
    %276 = vdwg.mxu0
    %v277 = vpack.c.bf16 %v274, %v269
    %v278 = vld [vmem:[%s5] sm:$0x1]
    %v280 = vlaneseq
    %v281 = vshrl.u32 %v280, 7
    %v282 = vsub.s32 0, %v281
    %v283 = vrot.slane %v278, %v282
    %285 = vmatprep.subr.bf16.mxu0 0
    %286 = vmatpush1.bf16.msra.mxu0 %v277
    %287 = vmatprep.subr.bf16.mxu0 0
    %288 = vmatpush1.bf16.msra.mxu0 0
    %289 = vmatprep.subr.bf16.mxu0 0
    %290 = vmatpush1.bf16.msra.mxu0 0
    %291 = vmatprep.subr.bf16.mxu0 0
    %292 = vmatpush1.bf16.msra.mxu0 0
    %293 = vmatprep.subr.bf16.mxu0 0
    %294 = vmatpush1.bf16.msra.mxu0 0
    %295 = vmatprep.subr.bf16.mxu0 0
    %296 = vmatpush1.bf16.msra.mxu0 0
    %297 = vmatprep.subr.bf16.mxu0 0
    %298 = vmatpush1.bf16.msra.mxu0 0
    %299 = vmatprep.subr.bf16.mxu0 0
    %300 = vmatpush1.bf16.msra.mxu0 0
    %301 = vmatprep.subr.bf16.mxu0 0
    %302 = vmatpush1.bf16.msra.mxu0 0
    %303 = vmatprep.subr.bf16.mxu0 0
    %304 = vmatpush1.bf16.msra.mxu0 0
    %305 = vmatprep.subr.bf16.mxu0 0
    %306 = vmatpush1.bf16.msra.mxu0 0
    %307 = vmatprep.subr.bf16.mxu0 0
    %308 = vmatpush1.bf16.msra.mxu0 0
    %309 = vmatprep.subr.bf16.mxu0 0
    %310 = vmatpush1.bf16.msra.mxu0 0
    %311 = vmatprep.subr.bf16.mxu0 0
    %312 = vmatpush1.bf16.msra.mxu0 0
    %313 = vmatprep.subr.bf16.mxu0 0
    %314 = vmatpush1.bf16.msra.mxu0 0
    %315 = vmatprep.subr.bf16.mxu0 0
    %316 = vmatpush1.bf16.msra.mxu0 0
    %317 = vmatprep.mubr.bf16.mxu0 0
    %318 = vmatmul.mubr.bf16.gmra.mrb[0].mxu0 %v56
    %v319 = vpop.f32.mrb[0].mxu0
    %v320 = vadd.f32 %v283, %v319
    %v321 = vpop.f32.mrb[0].mxu0
    %v322 = vpop.f32.mrb[0].mxu0
    %v323 = vadd.f32 %v283, %v322
    %v324 = vpop.f32.mrb[0].mxu0
    %325 = vdwg.mxu0
    %v326 = vmax.f32 %v320, 0.0
    %v327 = vmax.f32 %v323, 0.0
    %v328 = vld [vmem:[%s6] sm:$0xff]
    %v329 = vld [vmem:[%s6 + $0x8] sm:$0xff]
    %v331 = vsel %vm54, %v326, 0
    %v334 = vsel %vm54, %v327, 0
    %336 = vmatprep.subr.mxu0 0.0
    %337 = vmatpush1.msra.mxu0 %v328
    %338 = vmatprep.subr.mxu0 0.0
    %339 = vmatpush1.msra.mxu0 %v329
    %340 = vmatprep.subr.mxu0 0.0
    %341 = vmatpush1.msra.mxu0 0.0
    %342 = vmatprep.subr.mxu0 0.0
    %343 = vmatpush1.msra.mxu0 0.0
    %344 = vmatprep.subr.mxu0 0.0
    %345 = vmatpush1.msra.mxu0 0.0
    %346 = vmatprep.subr.mxu0 0.0
    %347 = vmatpush1.msra.mxu0 0.0
    %348 = vmatprep.subr.mxu0 0.0
    %349 = vmatpush1.msra.mxu0 0.0
    %350 = vmatprep.subr.mxu0 0.0
    %351 = vmatpush1.msra.mxu0 0.0
    %352 = vmatprep.subr.mxu0 0.0
    %353 = vmatpush1.msra.mxu0 0.0
    %354 = vmatprep.subr.mxu0 0.0
    %355 = vmatpush1.msra.mxu0 0.0
    %356 = vmatprep.subr.mxu0 0.0
    %357 = vmatpush1.msra.mxu0 0.0
    %358 = vmatprep.subr.mxu0 0.0
    %359 = vmatpush1.msra.mxu0 0.0
    %360 = vmatprep.subr.mxu0 0.0
    %361 = vmatpush1.msra.mxu0 0.0
    %362 = vmatprep.subr.mxu0 0.0
    %363 = vmatpush1.msra.mxu0 0.0
    %364 = vmatprep.subr.mxu0 0.0
    %365 = vmatpush1.msra.mxu0 0.0
    %366 = vmatprep.subr.mxu0 0.0
    %367 = vmatpush1.msra.mxu0 0.0
    %368 = vmatprep.subr.mxu0 0.0
    %369 = vmatpush1.msra.mxu0 0.0
    %370 = vmatprep.subr.mxu0 0.0
    %371 = vmatpush1.msra.mxu0 0.0
    %372 = vmatprep.subr.mxu0 0.0
    %373 = vmatpush1.msra.mxu0 0.0
    %374 = vmatprep.subr.mxu0 0.0
    %375 = vmatpush1.msra.mxu0 0.0
    %376 = vmatprep.subr.mxu0 0.0
    %377 = vmatpush1.msra.mxu0 0.0
    %378 = vmatprep.subr.mxu0 0.0
    %379 = vmatpush1.msra.mxu0 0.0
    %380 = vmatprep.subr.mxu0 0.0
    %381 = vmatpush1.msra.mxu0 0.0
    %382 = vmatprep.subr.mxu0 0.0
    %383 = vmatpush1.msra.mxu0 0.0
    %384 = vmatprep.subr.mxu0 0.0
    %385 = vmatpush1.msra.mxu0 0.0
    %386 = vmatprep.subr.mxu0 0.0
    %387 = vmatpush1.msra.mxu0 0.0
    %388 = vmatprep.subr.mxu0 0.0
    %389 = vmatpush1.msra.mxu0 0.0
    %390 = vmatprep.subr.mxu0 0.0
    %391 = vmatpush1.msra.mxu0 0.0
    %392 = vmatprep.subr.mxu0 0.0
    %393 = vmatpush1.msra.mxu0 0.0
    %394 = vmatprep.subr.mxu0 0.0
    %395 = vmatpush1.msra.mxu0 0.0
    %396 = vmatprep.subr.mxu0 0.0
    %397 = vmatpush1.msra.mxu0 0.0
    %398 = vmatprep.subr.mxu0 0.0
    %399 = vmatpush1.msra.mxu0 0.0
    %400 = vmatprep.mubr.f32.mxu0 0.0
    %401 = vmatmul.mubr.f32.gmra.mrb[0].mxu0 %v331
    %v402 = vpop.f32.mrb[0].mxu0
    %v403 = vadd.f32 0.0, %v402
    %v404 = vpop.f32.mrb[0].mxu0
    %405 = vmatprep.mubr.f32.mxu0 0.0
    %406 = vmatmul.mubr.f32.gmra.mrb[0].mxu0 %v334
    %v407 = vpop.f32.mrb[0].mxu0
    %v408 = vadd.f32 0.0, %v407
    %v409 = vpop.f32.mrb[0].mxu0
    %410 = vdwg.mxu0
    %v411 = vpack.c.bf16 %v408, %v403
    %v412 = vld [vmem:[%s7] sm:$0x1]
    %v414 = vlaneseq
    %v415 = vshrl.u32 %v414, 7
    %v416 = vsub.s32 0, %v415
    %v417 = vrot.slane %v412, %v416
    %419 = vmatprep.subr.bf16.mxu0 0
    %420 = vmatpush1.bf16.msra.mxu0 %v411
    %421 = vmatprep.subr.bf16.mxu0 0
    %422 = vmatpush1.bf16.msra.mxu0 0
    %423 = vmatprep.subr.bf16.mxu0 0
    %424 = vmatpush1.bf16.msra.mxu0 0
    %425 = vmatprep.subr.bf16.mxu0 0
    %426 = vmatpush1.bf16.msra.mxu0 0
    %427 = vmatprep.subr.bf16.mxu0 0
    %428 = vmatpush1.bf16.msra.mxu0 0
    %429 = vmatprep.subr.bf16.mxu0 0
    %430 = vmatpush1.bf16.msra.mxu0 0
    %431 = vmatprep.subr.bf16.mxu0 0
    %432 = vmatpush1.bf16.msra.mxu0 0
    %433 = vmatprep.subr.bf16.mxu0 0
    %434 = vmatpush1.bf16.msra.mxu0 0
    %435 = vmatprep.subr.bf16.mxu0 0
    %436 = vmatpush1.bf16.msra.mxu0 0
    %437 = vmatprep.subr.bf16.mxu0 0
    %438 = vmatpush1.bf16.msra.mxu0 0
    %439 = vmatprep.subr.bf16.mxu0 0
    %440 = vmatpush1.bf16.msra.mxu0 0
    %441 = vmatprep.subr.bf16.mxu0 0
    %442 = vmatpush1.bf16.msra.mxu0 0
    %443 = vmatprep.subr.bf16.mxu0 0
    %444 = vmatpush1.bf16.msra.mxu0 0
    %445 = vmatprep.subr.bf16.mxu0 0
    %446 = vmatpush1.bf16.msra.mxu0 0
    %447 = vmatprep.subr.bf16.mxu0 0
    %448 = vmatpush1.bf16.msra.mxu0 0
    %449 = vmatprep.subr.bf16.mxu0 0
    %450 = vmatpush1.bf16.msra.mxu0 0
    %451 = vmatprep.mubr.bf16.mxu0 0
    %452 = vmatmul.mubr.bf16.gmra.mrb[0].mxu0 %v56
    %v453 = vpop.f32.mrb[0].mxu0
    %v454 = vadd.f32 %v417, %v453
    %v455 = vpop.f32.mrb[0].mxu0
    %v456 = vpop.f32.mrb[0].mxu0
    %v457 = vadd.f32 %v417, %v456
    %v458 = vpop.f32.mrb[0].mxu0
    %459 = vdwg.mxu0
    %v460 = vmax.f32 %v454, 0.0
    %v461 = vmax.f32 %v457, 0.0
    %v462 = vld [vmem:[%s8] sm:$0x1]
    %v464 = vlaneseq
    %v465 = vshrl.u32 %v464, 7
    %v466 = vsub.s32 0, %v465
    %v467 = vrot.slane %v462, %v466
    %v469 = vmul.f32 %v460, %v467
    %v470 = vmul.f32 %v461, %v467
    %vm471 = vcmask 64512
    %v472 = vsel %vm471, %v469, 0.0
    %473 = vadd.xlane.f32.xlu0 %v472
    %v474 = vpop.xlane.xlu0 %473
    %v475 = vsel %vm471, %v470, 0.0
    %476 = vadd.xlane.f32.xlu0 %v475
    %v477 = vpop.xlane.xlu0 %476
    %v478 = vld [vmem:[#allocation2] sm:$0x1]
    %v480 = vlaneseq
    %v481 = vshrl.u32 %v480, 7
    %v482 = vsub.s32 0, %v481
    %v483 = vrot.slane %v478, %v482
    %v485 = vadd.f32 %v474, %v483
    %v486 = vadd.f32 %v477, %v483
    %v487 = vxor.u32 %v485, 2147483648
    %v488 = vxor.u32 %v486, 2147483648
    %v489 = vmul.f32 %v487, 1.442695
    %v490 = vpow.pop %v489
    %v491 = vmul.f32 %v488, 1.442695
    %v492 = vpow.pop %v491
    %v493 = vadd.f32 %v490, 1.0
    %v494 = vadd.f32 %v492, 1.0
    %v495 = vrcp.pop %v493
    %v496 = vmul.f32 1.0, %v495
    %v497 = vrcp.pop %v494
    %v498 = vmul.f32 1.0, %v497
    %500 = vset.pattern.permute.xlu0 0
    %501 = vperm.xlu0 %500, %v496
    %v502 = vpop.permute.xlu0 %501
    %505 = vset.pattern.permute.xlu0 0
    %506 = vperm.xlu0 %505, %v498
    %v507 = vpop.permute.xlu0 %506
    %509 = vst [vmem:[#allocation3] sm:$0xff] %v502
    %510 = vst [vmem:[#allocation3 + $0x8] sm:$0xff] %v507
    // Predicated region
    $region42: #{tpu_custom_call.1} parent=1 // pred_check
      _
    $region43: #{tpu_custom_call.1} parent=1 // pred_check_branch
      %512 = sbr.rel (0) target = $region45
    $region44: #{tpu_custom_call.1} parent=1 // pred_region
      %s514 = ssub.s32 256, 256
      %515 = vsyncadd [#allocation4], %s514
      %s516 = sshll.u32 [#allocation3], 4
      %s517 = int_to_ptr.vmem [resolvable:$true] %s516
      %522 = dma.vmem_to_hbm [thread:$0]  %s517, 256, %s10, [#allocation4], 128, 128, 8
    $region45: #{tpu_custom_call.1} parent=1 // pred_fallthru
      _
    // Predicated region
    $region46: #{tpu_custom_call.1} parent=1 // pred_check
      _
    $region47: #{tpu_custom_call.1} parent=1 // pred_check_branch
      %524 = sbr.rel (0) target = $region49
    $region48: #{tpu_custom_call.1} parent=1 // pred_region
      %525 = dma.done [#allocation4], 256
    $region49: #{tpu_custom_call.1} parent=1 // pred_fallthru
      _
    %526 = vsyncpa [#allocation4], 1

</llo_original>
